<compile_context>
chip_gen: v7x
topology: tpu7x:2x2x1
jax: 0.10.0
libtpu: 0.0.40
codegen_flags: <defaults>
</compile_context>

<pallas_src>
import functools

import jax
import jax.numpy as jnp
from jax.experimental import pallas as pl
from jax.experimental.pallas import tpu as pltpu


def full3net_kernel(x_ref, w1_ref, b1_ref, w2_ref, b2_ref, w3t_ref, b3_ref,
                    o_ref):
    # x_ref:  (2, TILE_N)   f32   lane-dense batch tile
    # w1_ref: (hid, 2)      f32   fc1.weight (PyTorch layout)
    # b1_ref: (hid, 1)      f32
    # w2_ref: (hid, hid)    bf16  fc2.weight (PyTorch layout, pre-cast)
    # b2_ref: (hid, 1)      f32
    # w3t_ref:(hid, 1)      f32   fc3.weight transposed
    # b3_ref: (1, 1)        f32
    # o_ref:  (1, TILE_N)   f32
    x = x_ref[...]
    w1 = w1_ref[...]

    # Layer 1: K=2 contraction -> two VPU broadcast FMAs (MXU would be ~2% used).
    z1 = w1[:, 0:1] * x[0:1, :] + w1[:, 1:2] * x[1:2, :] + b1_ref[...]
    h1 = jnp.tanh(z1)                                      # (hid, TILE_N) f32

    # Layer 2: hid x hid on the MXU with bf16 operands (MXU-native on
    # v5e/v6e/v7x; avoids multi-pass f32 decomposition), f32 accumulation.
    z2 = jnp.dot(w2_ref[...], h1.astype(jnp.bfloat16),
                 preferred_element_type=jnp.float32) + b2_ref[...]
    h2 = jnp.tanh(z2)                                      # (hid, TILE_N) f32

    # Layer 3: out_features=1 -> VPU multiply + sublane reduction (no MXU).
    z3 = jnp.sum(w3t_ref[...] * h2, axis=0, keepdims=True) + b3_ref[...]

    # Transcendentals stay f32: portable across v5e (no bf16 VPU/EUP) and
    # keeps tight parity with the f32 reference.
    o_ref[...] = jax.nn.sigmoid(z3)                        # (1, TILE_N)


def _full3net_pallas(xt, w1, b1, w2_bf16, b2, w3t, b3, tile_n):
    """xt: [2, n_pad] f32 with n_pad % tile_n == 0. Returns [1, n_pad] f32."""
    hid = w1.shape[0]
    n_pad = xt.shape[1]
    n_tiles = n_pad // tile_n

    def resident(shape):
        # Full-array block, constant index_map: DMA'd once, stays in VMEM.
        # (For very large hid on v7x, pipeline_mode=pl.Buffered(1) and/or
        #  K-tiling of w2 would reclaim VMEM; unnecessary at this scale.)
        return pl.BlockSpec(shape, lambda i: (0, 0))

    cost = pl.CostEstimate(
        flops=int(n_pad) * (2 * 2 * hid + 2 * hid * hid + 2 * hid),
        transcendentals=int(n_pad) * (2 * hid + 1),
        bytes_accessed=int(n_pad) * (2 * 4 + 4),
    )

    return pl.pallas_call(
        full3net_kernel,
        out_shape=jax.ShapeDtypeStruct((1, n_pad), jnp.float32),
        grid=(n_tiles,),
        in_specs=[
            pl.BlockSpec((2, tile_n), lambda i: (0, i)),   # x tile
            resident((hid, 2)),                            # w1
            resident((hid, 1)),                            # b1
            resident((hid, hid)),                          # w2 (bf16)
            resident((hid, 1)),                            # b2
            resident((hid, 1)),                            # w3^T
            resident((1, 1)),                              # b3
        ],
        out_specs=pl.BlockSpec((1, tile_n), lambda i: (0, i)),
        compiler_params=pltpu.CompilerParams(
            dimension_semantics=("parallel",),
            vmem_limit_bytes=32 * 1024 * 1024,  # conservative: fits v7x 64 MiB
        ),
        cost_estimate=cost,
    )(xt, w1, b1, w2_bf16, b2, w3t, b3)


@functools.partial(jax.jit, static_argnames=("tile_n",))
def full3net_forward_t(xt, params, tile_n=4096):
    """Lane-dense entry point: xt is [2, N] float32, returns [1, N].

    Use this when the caller already has the batch on the lane axis; it avoids
    all wrapper-side transpose/reshape HBM traffic.
    """
    n = xt.shape[1]
    # Clamp the tile for small batches (a batch of 8 computes a 128-wide tile,
    # not a 4096-wide one); keep it a multiple of 128 (lane width).
    tile = min(int(tile_n), pl.cdiv(n, 128) * 128)
    n_pad = pl.cdiv(n, tile) * tile

    xt = xt.astype(jnp.float32)
    if n_pad != n:
        xt = jnp.pad(xt, ((0, 0), (0, n_pad - n)))

    out = _full3net_pallas(
        xt,
        params["w1"], params["b1"],
        params["w2"].astype(jnp.bfloat16),   # cast once per call, outside kernel
        params["b2"], params["w3t"], params["b3"],
        tile,
    )
    return out[:, :n]


@functools.partial(jax.jit, static_argnames=("tile_n",))
def full3net_forward(x, params, tile_n=4096):
    """x: [N, 2] float32 -> [N, 1] float32, matching Full3Net.forward.

    Transpose / pad / slice / reshape live inside the same jit as the kernel
    so XLA fuses them instead of doing separate full HBM passes.
    """
    n = x.shape[0]
    out = full3net_forward_t(x.T, params, tile_n=tile_n)
    return out[0].reshape(n, 1)


def init_params(hid, key):
    """Deterministic init mirroring nn.Linear defaults.

    Weights are stored in PyTorch layout ([out, in]); fc3's weight is kept
    transposed ([hid, 1]) and biases as column vectors for the lane-dense
    kernel layout. All f32; the fc2 weight is cast to bf16 at call time.
    """
    ks = jax.random.split(key, 6)

    def lin(kw, kb, fan_in, fan_out):
        bound = 1.0 / jnp.sqrt(fan_in)
        w = jax.random.uniform(kw, (fan_out, fan_in), jnp.float32, -bound, bound)
        b = jax.random.uniform(kb, (fan_out, 1), jnp.float32, -bound, bound)
        return w, b

    w1, b1 = lin(ks[0], ks[1], 2, hid)       # (hid, 2), (hid, 1)
    w2, b2 = lin(ks[2], ks[3], hid, hid)     # (hid, hid), (hid, 1)
    w3, b3 = lin(ks[4], ks[5], hid, 1)       # (1, hid), (1, 1)
    return dict(w1=w1, b1=b1, w2=w2, b2=b2, w3t=w3.T, b3=b3)


def full3net_reference(x, p):
    h1 = jnp.tanh(x @ p["w1"].T + p["b1"].T)
    h2 = jnp.tanh(h1 @ p["w2"].T + p["b2"].T)
    return jax.nn.sigmoid(h2 @ p["w3t"] + p["b3"])


if __name__ == "__main__":
    key = jax.random.PRNGKey(0)
    k_x, k_p = jax.random.split(key)

    batch, hid = 8, 32
    x = jax.random.normal(k_x, (batch, 2), dtype=jnp.float32)
    params = init_params(hid, k_p)

    out = full3net_forward(x, params)
    out = jax.block_until_ready(out)

    ref = full3net_reference(x, params)
    assert out.shape == (batch, 1)
    # Layer-2 uses bf16 MXU operands (f32 accumulation), so compare against
    # the pure-f32 reference at a looser tolerance than exact f32 parity.
    assert jnp.allclose(out, ref, atol=1e-2, rtol=1e-2), (
        f"max abs err = {jnp.max(jnp.abs(out - ref))}")

    print("KERNEL_OK")
</pallas_src>

<mosaic_0001>
module attributes {stable_mosaic.version = 11 : i64} {
  func.func @full3net_kernel(%arg0: i32, %arg1: memref<2x128xf32, #tpu.memory_space<vmem>>, %arg2: memref<32x2xf32, #tpu.memory_space<vmem>>, %arg3: memref<32x1xf32, #tpu.memory_space<vmem>>, %arg4: memref<32x32xbf16, #tpu.memory_space<vmem>>, %arg5: memref<32x1xf32, #tpu.memory_space<vmem>>, %arg6: memref<32x1xf32, #tpu.memory_space<vmem>>, %arg7: memref<1x1xf32, #tpu.memory_space<vmem>>, %arg8: memref<1x128xf32, #tpu.memory_space<vmem>>) attributes {dimension_semantics = [#tpu.dimension_semantics<parallel>], iteration_bounds = array<i64: 1>, scalar_prefetch = 0 : i64, scratch_operands = 0 : i64, tpu.core_type = #tpu.core_type<tc>, window_params = [{transform_indices = @transform_0, window_bounds = array<i64: 2, 128>}, {pipeline_mode = #tpu.pipeline_mode<synchronous>, transform_indices = @transform_1, window_bounds = array<i64: 32, 2>}, {pipeline_mode = #tpu.pipeline_mode<synchronous>, transform_indices = @transform_2, window_bounds = array<i64: 32, 1>}, {pipeline_mode = #tpu.pipeline_mode<synchronous>, transform_indices = @transform_3, window_bounds = array<i64: 32, 32>}, {pipeline_mode = #tpu.pipeline_mode<synchronous>, transform_indices = @transform_4, window_bounds = array<i64: 32, 1>}, {pipeline_mode = #tpu.pipeline_mode<synchronous>, transform_indices = @transform_5, window_bounds = array<i64: 32, 1>}, {pipeline_mode = #tpu.pipeline_mode<synchronous>, transform_indices = @transform_6, window_bounds = array<i64: 1, 1>}, {transform_indices = @transform_7, window_bounds = array<i64: 1, 128>}]} {
    %c0 = arith.constant 0 : index
    %c0_0 = arith.constant 0 : index
    %0 = vector.load %arg1[%c0, %c0_0] : memref<2x128xf32, #tpu.memory_space<vmem>>, vector<2x128xf32>
    %c0_1 = arith.constant 0 : index
    %c0_2 = arith.constant 0 : index
    %1 = vector.load %arg2[%c0_1, %c0_2] : memref<32x2xf32, #tpu.memory_space<vmem>>, vector<32x2xf32>
    %2 = vector.extract_strided_slice %1 {offsets = [0, 0], sizes = [32, 1], strides = [1, 1]} : vector<32x2xf32> to vector<32x1xf32>
    %3 = vector.extract_strided_slice %0 {offsets = [0, 0], sizes = [1, 128], strides = [1, 1]} : vector<2x128xf32> to vector<1x128xf32>
    %4 = vector.broadcast %2 : vector<32x1xf32> to vector<32x128xf32>
    %5 = vector.broadcast %3 : vector<1x128xf32> to vector<32x128xf32>
    %6 = arith.mulf %4, %5 : vector<32x128xf32>
    %7 = vector.extract_strided_slice %1 {offsets = [0, 1], sizes = [32, 1], strides = [1, 1]} : vector<32x2xf32> to vector<32x1xf32>
    %8 = vector.extract_strided_slice %0 {offsets = [1, 0], sizes = [1, 128], strides = [1, 1]} : vector<2x128xf32> to vector<1x128xf32>
    %9 = vector.broadcast %7 : vector<32x1xf32> to vector<32x128xf32>
    %10 = vector.broadcast %8 : vector<1x128xf32> to vector<32x128xf32>
    %11 = arith.mulf %9, %10 : vector<32x128xf32>
    %12 = arith.addf %6, %11 : vector<32x128xf32>
    %c0_3 = arith.constant 0 : index
    %c0_4 = arith.constant 0 : index
    %13 = vector.load %arg3[%c0_3, %c0_4] : memref<32x1xf32, #tpu.memory_space<vmem>>, vector<32x1xf32>
    %14 = vector.broadcast %13 : vector<32x1xf32> to vector<32x128xf32>
    %15 = arith.addf %12, %14 : vector<32x128xf32>
    %16 = math.tanh %15 : vector<32x128xf32>
    %c0_5 = arith.constant 0 : index
    %c0_6 = arith.constant 0 : index
    %17 = vector.load %arg4[%c0_5, %c0_6] : memref<32x32xbf16, #tpu.memory_space<vmem>>, vector<32x32xbf16>
    %18 = arith.truncf %16 : vector<32x128xf32> to vector<32x128xbf16>
    %cst = arith.constant dense<0.000000e+00> : vector<32x128xf32>
    %19 = tpu.matmul %17, %18, %cst {dimension_numbers = #tpu.dot_dimension_numbers<[1], [0], [0], [1], [0, 0, 1, 1], [], []>} : vector<32x32xbf16>, vector<32x128xbf16>, vector<32x128xf32> -> vector<32x128xf32>
    %c0_7 = arith.constant 0 : index
    %c0_8 = arith.constant 0 : index
    %20 = vector.load %arg5[%c0_7, %c0_8] : memref<32x1xf32, #tpu.memory_space<vmem>>, vector<32x1xf32>
    %21 = vector.broadcast %20 : vector<32x1xf32> to vector<32x128xf32>
    %22 = arith.addf %19, %21 : vector<32x128xf32>
    %23 = math.tanh %22 : vector<32x128xf32>
    %c0_9 = arith.constant 0 : index
    %c0_10 = arith.constant 0 : index
    %24 = vector.load %arg6[%c0_9, %c0_10] : memref<32x1xf32, #tpu.memory_space<vmem>>, vector<32x1xf32>
    %25 = vector.broadcast %24 : vector<32x1xf32> to vector<32x128xf32>
    %26 = arith.mulf %25, %23 : vector<32x128xf32>
    %cst_11 = arith.constant dense<0.000000e+00> : vector<128xf32>
    %27 = vector.multi_reduction <add>, %26, %cst_11 [0] : vector<32x128xf32> to vector<128xf32>
    %28 = vector.shape_cast %27 : vector<128xf32> to vector<1x128xf32>
    %c0_12 = arith.constant 0 : index
    %c0_13 = arith.constant 0 : index
    %29 = vector.load %arg7[%c0_12, %c0_13] : memref<1x1xf32, #tpu.memory_space<vmem>>, vector<1x1xf32>
    %30 = vector.broadcast %29 : vector<1x1xf32> to vector<1x128xf32>
    %31 = arith.addf %28, %30 : vector<1x128xf32>
    %32 = arith.negf %31 : vector<1x128xf32>
    %33 = math.exp %32 : vector<1x128xf32>
    %cst_14 = arith.constant 1.000000e+00 : f32
    %34 = vector.broadcast %cst_14 : f32 to vector<1x128xf32>
    %35 = arith.addf %34, %33 : vector<1x128xf32>
    %36 = arith.divf %34, %35 : vector<1x128xf32>
    %c0_15 = arith.constant 0 : index
    %c0_16 = arith.constant 0 : index
    %37 = vector.load %arg8[%c0_15, %c0_16] : memref<1x128xf32, #tpu.memory_space<vmem>>, vector<1x128xf32>
    tpu.vector_store %arg8[%c0_15, %c0_16], %36 {strides = array<i32>} : memref<1x128xf32, #tpu.memory_space<vmem>>, vector<1x128xf32>,
    return
  }
  func.func @transform_0(%arg0: i32) -> (i32, i32) {
    %c0_i32 = arith.constant 0 : i32
    %c0_i32_0 = arith.constant 0 : i32
    return %c0_i32, %arg0 : i32, i32
  }
  func.func @transform_1(%arg0: i32) -> (i32, i32) {
    %c0_i32 = arith.constant 0 : i32
    %c0_i32_0 = arith.constant 0 : i32
    %c0_i32_1 = arith.constant 0 : i32
    return %c0_i32, %c0_i32_0 : i32, i32
  }
  func.func @transform_2(%arg0: i32) -> (i32, i32) {
    %c0_i32 = arith.constant 0 : i32
    %c0_i32_0 = arith.constant 0 : i32
    %c0_i32_1 = arith.constant 0 : i32
    return %c0_i32, %c0_i32_0 : i32, i32
  }
  func.func @transform_3(%arg0: i32) -> (i32, i32) {
    %c0_i32 = arith.constant 0 : i32
    %c0_i32_0 = arith.constant 0 : i32
    %c0_i32_1 = arith.constant 0 : i32
    return %c0_i32, %c0_i32_0 : i32, i32
  }
  func.func @transform_4(%arg0: i32) -> (i32, i32) {
    %c0_i32 = arith.constant 0 : i32
    %c0_i32_0 = arith.constant 0 : i32
    %c0_i32_1 = arith.constant 0 : i32
    return %c0_i32, %c0_i32_0 : i32, i32
  }
  func.func @transform_5(%arg0: i32) -> (i32, i32) {
    %c0_i32 = arith.constant 0 : i32
    %c0_i32_0 = arith.constant 0 : i32
    %c0_i32_1 = arith.constant 0 : i32
    return %c0_i32, %c0_i32_0 : i32, i32
  }
  func.func @transform_6(%arg0: i32) -> (i32, i32) {
    %c0_i32 = arith.constant 0 : i32
    %c0_i32_0 = arith.constant 0 : i32
    %c0_i32_1 = arith.constant 0 : i32
    return %c0_i32, %c0_i32_0 : i32, i32
  }
  func.func @transform_7(%arg0: i32) -> (i32, i32) {
    %c0_i32 = arith.constant 0 : i32
    %c0_i32_0 = arith.constant 0 : i32
    return %c0_i32, %arg0 : i32, i32
  }
}

</mosaic_0001>

<llo_original>
// kernel: full3net_forward_t.1
$region0: #{full3net_forward_t.1}
  #allocation0 [shape = 'u32[]', space=smem, size = 0x4, offset = 0x4, fixed_abs, tag = 'smem constant byte address 0x4 - core index']
  #allocation1 [shape = 'u32[144,128]{1,0:T(1,128)}', space=vmem, size = 0x12000, scoped, tag = 'internal scratch']
  #allocation2 [shape = 'f32[1,1]{1,0:T(1,128)S(1)}', space=vmem, size = 0x200, scoped, tag = 'scoped memory for full3net_forward_t.1']
  %s0 = inlined_call_operand.vmem [shape: f32[2,128], index: 0, kind: input, shape index: {}]
  %s1 = inlined_call_operand.vmem [shape: f32[32,2], index: 1, kind: input, shape index: {}]
  %s2 = inlined_call_operand.vmem [shape: f32[32,1], index: 2, kind: input, shape index: {}]
  %s3 = inlined_call_operand.vmem [shape: bf16[32,32], index: 3, kind: input, shape index: {}]
  %s4 = inlined_call_operand.vmem [shape: f32[32,1], index: 4, kind: input, shape index: {}]
  %s5 = inlined_call_operand.vmem [shape: f32[32,1], index: 5, kind: input, shape index: {}]
  %s6 = inlined_call_operand.<no memory space> [shape: f32[1,1], index: 6, kind: input, shape index: {}]
  %s7 = inlined_call_operand.hbm [shape: f32[1,128], index: 7, kind: output, shape index: {}]
  %s8 = sld [smem:[#allocation0]]
  $region38: #{full3net_forward_t.1} parent=0
    _
  %s10 = ssub.s32 1, %s8
  %s11 = scalar_select 0, %s10, %s8
  %v12 = vstv %s6
  %13 = vst [vmem:[#allocation2] sm:$0x1] %v12
  $region1: #{full3net_forward_t.1} parent=0
    #allocation3 [shape = 'u8[512]{0}', space=vmem, size = 0x400, scoped, tag = 'output window, operand 0, single buffered']
    #allocation4 [shape = 's32[1]{0}', space=sflag, size = 0x4, scoped, tag = 'scoped memory for full3net_forward_t.1']
    %14 = vsyncpa [#allocation4], 0
    // Predicated region
    $region2: #{full3net_forward_t.1} parent=1 // pred_check
      _
    $region3: #{full3net_forward_t.1} parent=1 // pred_check_branch
      %16 = sbr.rel (0) target = $region5
    $region4: #{full3net_forward_t.1} parent=1 // pred_region
      _
    $region5: #{full3net_forward_t.1} parent=1 // pred_fallthru
      _
    // Predicated region
    $region6: #{full3net_forward_t.1} parent=1 // pred_check
      _
    $region7: #{full3net_forward_t.1} parent=1 // pred_check_branch
      %18 = sbr.rel (0) target = $region9
    $region8: #{full3net_forward_t.1} parent=1 // pred_region
      _
    $region9: #{full3net_forward_t.1} parent=1 // pred_fallthru
      _
    // Predicated region
    $region10: #{full3net_forward_t.1} parent=1 // pred_check
      _
    $region11: #{full3net_forward_t.1} parent=1 // pred_check_branch
      %20 = sbr.rel (0) target = $region13
    $region12: #{full3net_forward_t.1} parent=1 // pred_region
      _
    $region13: #{full3net_forward_t.1} parent=1 // pred_fallthru
      _
    // Predicated region
    $region14: #{full3net_forward_t.1} parent=1 // pred_check
      _
    $region15: #{full3net_forward_t.1} parent=1 // pred_check_branch
      %22 = sbr.rel (0) target = $region17
    $region16: #{full3net_forward_t.1} parent=1 // pred_region
      _
    $region17: #{full3net_forward_t.1} parent=1 // pred_fallthru
      _
    // Predicated region
    $region18: #{full3net_forward_t.1} parent=1 // pred_check
      _
    $region19: #{full3net_forward_t.1} parent=1 // pred_check_branch
      %24 = sbr.rel (0) target = $region21
    $region20: #{full3net_forward_t.1} parent=1 // pred_region
      _
    $region21: #{full3net_forward_t.1} parent=1 // pred_fallthru
      _
    // Predicated region
    $region22: #{full3net_forward_t.1} parent=1 // pred_check
      _
    $region23: #{full3net_forward_t.1} parent=1 // pred_check_branch
      %26 = sbr.rel (0) target = $region25
    $region24: #{full3net_forward_t.1} parent=1 // pred_region
      _
    $region25: #{full3net_forward_t.1} parent=1 // pred_fallthru
      _
    // Predicated region
    $region26: #{full3net_forward_t.1} parent=1 // pred_check
      _
    $region27: #{full3net_forward_t.1} parent=1 // pred_check_branch
      %28 = sbr.rel (0) target = $region29
    $region28: #{full3net_forward_t.1} parent=1 // pred_region
      _
    $region29: #{full3net_forward_t.1} parent=1 // pred_fallthru
      _
    %v30 = vld [vmem:[%s0] sm:$0x3]
    %v31 = vld [vmem:[%s1] sm:$0xff]
    %v32 = vld [vmem:[%s1 + $0x8] sm:$0xff]
    %v33 = vld [vmem:[%s1 + $0x10] sm:$0xff]
    %v34 = vld [vmem:[%s1 + $0x18] sm:$0xff]
    %36 = vset.pattern.permute.xlu0 0
    %37 = vperm.xlu0 %36, %v31
    %v38 = vpop.permute.xlu0 %37
    %41 = vset.pattern.permute.xlu0 0
    %42 = vperm.xlu0 %41, %v32
    %v43 = vpop.permute.xlu0 %42
    %46 = vset.pattern.permute.xlu0 0
    %47 = vperm.xlu0 %46, %v33
    %v48 = vpop.permute.xlu0 %47
    %51 = vset.pattern.permute.xlu0 0
    %52 = vperm.xlu0 %51, %v34
    %v53 = vpop.permute.xlu0 %52
    %v55 = vlaneseq
    %v56 = vshrl.u32 %v55, 7
    %v57 = vsub.s32 0, %v56
    %v58 = vrot.slane %v30, %v57
    %v59 = vmul.f32 %v38, %v58
    %v60 = vmul.f32 %v43, %v58
    %v61 = vmul.f32 %v48, %v58
    %v62 = vmul.f32 %v53, %v58
    %63 = vset.pattern.permute.xlu0 1
    %64 = vperm.xlu0 %63, %v31
    %v65 = vpop.permute.xlu0 %64
    %67 = vset.pattern.permute.xlu0 1
    %68 = vperm.xlu0 %67, %v32
    %v69 = vpop.permute.xlu0 %68
    %71 = vset.pattern.permute.xlu0 1
    %72 = vperm.xlu0 %71, %v33
    %v73 = vpop.permute.xlu0 %72
    %75 = vset.pattern.permute.xlu0 1
    %76 = vperm.xlu0 %75, %v34
    %v77 = vpop.permute.xlu0 %76
    %v79 = vlaneseq
    %v80 = vshrl.u32 %v79, 7
    %v81 = vsub.s32 1, %v80
    %v82 = vrot.slane %v30, %v81
    %v83 = vmul.f32 %v65, %v82
    %v84 = vmul.f32 %v69, %v82
    %v85 = vmul.f32 %v73, %v82
    %v86 = vmul.f32 %v77, %v82
    %v87 = vadd.f32 %v59, %v83
    %v88 = vadd.f32 %v60, %v84
    %v89 = vadd.f32 %v61, %v85
    %v90 = vadd.f32 %v62, %v86
    %v91 = vld [vmem:[%s2] sm:$0xff]
    %v92 = vld [vmem:[%s2 + $0x8] sm:$0xff]
    %v93 = vld [vmem:[%s2 + $0x10] sm:$0xff]
    %v94 = vld [vmem:[%s2 + $0x18] sm:$0xff]
    %96 = vset.pattern.permute.xlu0 0
    %97 = vperm.xlu0 %96, %v91
    %v98 = vpop.permute.xlu0 %97
    %101 = vset.pattern.permute.xlu0 0
    %102 = vperm.xlu0 %101, %v92
    %v103 = vpop.permute.xlu0 %102
    %106 = vset.pattern.permute.xlu0 0
    %107 = vperm.xlu0 %106, %v93
    %v108 = vpop.permute.xlu0 %107
    %111 = vset.pattern.permute.xlu0 0
    %112 = vperm.xlu0 %111, %v94
    %v113 = vpop.permute.xlu0 %112
    %v115 = vadd.f32 %v87, %v98
    %v116 = vadd.f32 %v88, %v103
    %v117 = vadd.f32 %v89, %v108
    %v118 = vadd.f32 %v90, %v113
    %v119 = vtanh.pop %v115
    %v120 = vtanh.pop %v116
    %v121 = vtanh.pop %v117
    %v122 = vtanh.pop %v118
    %v123 = vld [vmem:[%s3] sm:$0xf]
    %v124 = vld [vmem:[%s3 + $0x4] sm:$0xf]
    %v125 = vld [vmem:[%s3 + $0x8] sm:$0xf]
    %v126 = vld [vmem:[%s3 + $0xc] sm:$0xf]
    %v127 = vpack.c.bf16 %v120, %v119
    %v128 = vpack.c.bf16 %v122, %v121
    %v129 = vld [vmem:[%s4] sm:$0xff]
    %v130 = vld [vmem:[%s4 + $0x8] sm:$0xff]
    %v131 = vld [vmem:[%s4 + $0x10] sm:$0xff]
    %v132 = vld [vmem:[%s4 + $0x18] sm:$0xff]
    %134 = vset.pattern.permute.xlu0 0
    %135 = vperm.xlu0 %134, %v129
    %v136 = vpop.permute.xlu0 %135
    %139 = vset.pattern.permute.xlu0 0
    %140 = vperm.xlu0 %139, %v130
    %v141 = vpop.permute.xlu0 %140
    %144 = vset.pattern.permute.xlu0 0
    %145 = vperm.xlu0 %144, %v131
    %v146 = vpop.permute.xlu0 %145
    %149 = vset.pattern.permute.xlu0 0
    %150 = vperm.xlu0 %149, %v132
    %v151 = vpop.permute.xlu0 %150
    %v157 = vunpack.c.l.b16 %v123
    %v158 = vunpack.c.l.b16 %v124
    %v159 = vunpack.c.l.b16 %v125
    %v160 = vunpack.c.l.b16 %v126
    %v161 = vpack.c.b16 %v158, %v157
    %v162 = vpack.c.b16 %v160, %v159
    %vm163 = vcmask 261120
    %v165 = vsel %vm163, %v161, 0
    %v168 = vsel %vm163, %v162, 0
    %170 = vmatprep.subr.bf16.mxu0 0
    %171 = vmatpush1.bf16.msra.mxu0 %v127
    %172 = vmatprep.subr.bf16.mxu0 0
    %173 = vmatpush1.bf16.msra.mxu0 %v128
    %174 = vmatprep.subr.bf16.mxu0 0
    %175 = vmatpush1.bf16.msra.mxu0 0
    %176 = vmatprep.subr.bf16.mxu0 0
    %177 = vmatpush1.bf16.msra.mxu0 0
    %178 = vmatprep.subr.bf16.mxu0 0
    %179 = vmatpush1.bf16.msra.mxu0 0
    %180 = vmatprep.subr.bf16.mxu0 0
    %181 = vmatpush1.bf16.msra.mxu0 0
    %182 = vmatprep.subr.bf16.mxu0 0
    %183 = vmatpush1.bf16.msra.mxu0 0
    %184 = vmatprep.subr.bf16.mxu0 0
    %185 = vmatpush1.bf16.msra.mxu0 0
    %186 = vmatprep.subr.bf16.mxu0 0
    %187 = vmatpush1.bf16.msra.mxu0 0
    %188 = vmatprep.subr.bf16.mxu0 0
    %189 = vmatpush1.bf16.msra.mxu0 0
    %190 = vmatprep.subr.bf16.mxu0 0
    %191 = vmatpush1.bf16.msra.mxu0 0
    %192 = vmatprep.subr.bf16.mxu0 0
    %193 = vmatpush1.bf16.msra.mxu0 0
    %194 = vmatprep.subr.bf16.mxu0 0
    %195 = vmatpush1.bf16.msra.mxu0 0
    %196 = vmatprep.subr.bf16.mxu0 0
    %197 = vmatpush1.bf16.msra.mxu0 0
    %198 = vmatprep.subr.bf16.mxu0 0
    %199 = vmatpush1.bf16.msra.mxu0 0
    %200 = vmatprep.subr.bf16.mxu0 0
    %201 = vmatpush1.bf16.msra.mxu0 0
    %202 = vmatprep.mubr.bf16.mxu0 0
    %203 = vmatmul.mubr.bf16.gmra.mrb[0].mxu0 %v165
    %v204 = vpop.f32.mrb[0].mxu0
    %v205 = vadd.f32 %v136, %v204
    %v206 = vpop.f32.mrb[0].mxu0
    %v207 = vpop.f32.mrb[0].mxu0
    %v208 = vadd.f32 %v141, %v207
    %v209 = vpop.f32.mrb[0].mxu0
    %210 = vmatprep.mubr.bf16.mxu0 0
    %211 = vmatmul.mubr.bf16.gmra.mrb[0].mxu0 %v168
    %v212 = vpop.f32.mrb[0].mxu0
    %v213 = vadd.f32 %v146, %v212
    %v214 = vpop.f32.mrb[0].mxu0
    %v215 = vpop.f32.mrb[0].mxu0
    %v216 = vadd.f32 %v151, %v215
    %v217 = vpop.f32.mrb[0].mxu0
    %218 = vdwg.mxu0
    %v219 = vtanh.pop %v205
    %v220 = vtanh.pop %v208
    %v221 = vtanh.pop %v213
    %v222 = vtanh.pop %v216
    %v223 = vld [vmem:[%s5] sm:$0xff]
    %v224 = vld [vmem:[%s5 + $0x8] sm:$0xff]
    %v225 = vld [vmem:[%s5 + $0x10] sm:$0xff]
    %v226 = vld [vmem:[%s5 + $0x18] sm:$0xff]
    %228 = vset.pattern.permute.xlu0 0
    %229 = vperm.xlu0 %228, %v223
    %v230 = vpop.permute.xlu0 %229
    %233 = vset.pattern.permute.xlu0 0
    %234 = vperm.xlu0 %233, %v224
    %v235 = vpop.permute.xlu0 %234
    %238 = vset.pattern.permute.xlu0 0
    %239 = vperm.xlu0 %238, %v225
    %v240 = vpop.permute.xlu0 %239
    %243 = vset.pattern.permute.xlu0 0
    %244 = vperm.xlu0 %243, %v226
    %v245 = vpop.permute.xlu0 %244
    %v247 = vmul.f32 %v230, %v219
    %v248 = vmul.f32 %v235, %v220
    %v249 = vmul.f32 %v240, %v221
    %v250 = vmul.f32 %v245, %v222
    %v251 = vadd.f32 %v247, %v248
    %v252 = vadd.f32 %v251, %v249
    %v253 = vadd.f32 %v252, %v250
    %v254 = vrot.slane %v253, 4
    %v255 = vadd.f32 %v253, %v254
    %v256 = vrot.slane %v255, 2
    %v257 = vadd.f32 %v255, %v256
    %v258 = vrot.slane %v257, 1
    %v259 = vadd.f32 %v257, %v258
    %v260 = vld [vmem:[#allocation2] sm:$0x1]
    %262 = vset.pattern.permute.xlu0 0
    %263 = vperm.xlu0 %262, %v260
    %v264 = vpop.permute.xlu0 %263
    %v266 = vlaneseq
    %v267 = vshrl.u32 %v266, 7
    %v268 = vsub.s32 0, %v267
    %v269 = vrot.slane %v264, %v268
    %v270 = vadd.f32 %v259, %v269
    %v271 = vxor.u32 %v270, 2147483648
    %v272 = vmul.f32 %v271, 1.442695
    %v273 = vpow.pop %v272
    %v274 = vadd.f32 %v273, 1.0
    %v275 = vrcp.pop %v274
    %v276 = vmul.f32 1.0, %v275
    %277 = vst [vmem:[#allocation3] sm:$0x1] %v276
    // Predicated region
    $region30: #{full3net_forward_t.1} parent=1 // pred_check
      _
    $region31: #{full3net_forward_t.1} parent=1 // pred_check_branch
      %279 = sbr.rel (0) target = $region33
    $region32: #{full3net_forward_t.1} parent=1 // pred_region
      %s281 = ssub.s32 16, 16
      %282 = vsyncadd [#allocation4], %s281
      %s284 = sshll.u32 [#allocation3], 4
      %s285 = int_to_ptr.vmem [resolvable:$true] %s284
      %287 = dma.vmem_to_hbm [thread:$0]  %s285, 16, %s7, [#allocation4]
    $region33: #{full3net_forward_t.1} parent=1 // pred_fallthru
      _
    // Predicated region
    $region34: #{full3net_forward_t.1} parent=1 // pred_check
      _
    $region35: #{full3net_forward_t.1} parent=1 // pred_check_branch
      %289 = sbr.rel (0) target = $region37
    $region36: #{full3net_forward_t.1} parent=1 // pred_region
      %290 = dma.done [#allocation4], 16
    $region37: #{full3net_forward_t.1} parent=1 // pred_fallthru
      _
    %291 = vsyncpa [#allocation4], 1

</llo_original>
